<compile_context>
chip_gen: v7x
topology: tpu7x:2x2x1
jax: 0.10.0
libtpu: 0.0.40
codegen_flags: <defaults>
</compile_context>

<pallas_src>
import jax
import jax.numpy as jnp
from jax.experimental import pallas as pl
from jax.experimental.pallas import tpu as pltpu

# Only split the copy into multiple in-flight DMAs above this size.
_CHUNK_THRESHOLD_BYTES = 1 * 1024 * 1024
_MAX_INFLIGHT_DMAS = 4


def _chunk_bounds(length, n_chunks):
    """Split [0, length) into up to n_chunks contiguous (start, size) pieces."""
    base, rem = divmod(length, n_chunks)
    bounds = []
    start = 0
    for i in range(n_chunks):
        size = base + (1 if i < rem else 0)
        if size > 0:
            bounds.append((start, size))
        start += size
    return bounds


def _make_chunked_copy_kernel(chunks):
    """Kernel issuing one HBM->HBM DMA per chunk, all in flight, then waiting."""

    def kernel(x_hbm, o_hbm, sems):
        copies = []
        for i, (start, size) in enumerate(chunks):
            cp = pltpu.make_async_copy(
                x_hbm.at[pl.ds(start, size)],
                o_hbm.at[pl.ds(start, size)],
                sems.at[i],
            )
            cp.start()
            copies.append(cp)
        for cp in copies:
            cp.wait()

    return kernel, len(chunks)


def identity_copy_pallas(x):
    """Materialized identity copy of `x` via direct HBM->HBM DMA (no VMEM staging)."""
    x = jnp.asarray(x)
    total = int(x.size)
    if total == 0:
        return x
    if x.ndim == 0:
        # DMA wants at least one axis to slice; round-trip through a (1,) view.
        return identity_copy_pallas(x.reshape(1)).reshape(())

    itemsize = jnp.dtype(x.dtype).itemsize
    nbytes = total * itemsize

    lead = x.shape[0]
    if nbytes >= _CHUNK_THRESHOLD_BYTES and lead >= 2:
        n_chunks = min(_MAX_INFLIGHT_DMAS, lead)
    else:
        n_chunks = 1
    chunks = _chunk_bounds(lead, n_chunks)
    kernel, n_sems = _make_chunked_copy_kernel(chunks)

    return pl.pallas_call(
        kernel,
        out_shape=jax.ShapeDtypeStruct(x.shape, x.dtype),
        in_specs=[pl.BlockSpec(memory_space=pl.ANY)],
        out_specs=pl.BlockSpec(memory_space=pl.ANY),
        scratch_shapes=[pltpu.SemaphoreType.DMA((n_sems,))],
        cost_estimate=pl.CostEstimate(
            flops=0, transcendentals=0, bytes_accessed=2 * nbytes
        ),
    )(x)


def identity_first_stage_forward(x):
    """Forward pass of IdentityFirstStage: returns x unchanged.

    The module has no parameters and no compute; the best "kernel" is no
    kernel.  Use `identity_copy_pallas` only when a distinct device buffer is
    explicitly required.
    """
    return x


class IdentityFirstStage:
    """JAX/Pallas port of ldm.models.autoencoder.IdentityFirstStage."""

    def __init__(self, *args, vq_interface=False, **kwargs):
        self.vq_interface = vq_interface
        # No parameters (the PyTorch module defines none).

    def encode(self, x, *args, **kwargs):
        return identity_first_stage_forward(x)

    def decode(self, x, *args, **kwargs):
        return identity_first_stage_forward(x)

    def quantize(self, x, *args, **kwargs):
        x = identity_first_stage_forward(x)
        if self.vq_interface:
            return (x, None, [None, None, None])
        return x

    def __call__(self, x, *args, **kwargs):
        return identity_first_stage_forward(x)


if __name__ == "__main__":
    key = jax.random.PRNGKey(0)
    x = jax.random.normal(key, (2, 4, 16, 16), dtype=jnp.float32)  # NCHW

    model = IdentityFirstStage()

    # Module forward: pure identity, no kernel, no HBM traffic.
    y = jax.block_until_ready(model(x))
    assert y.shape == x.shape and y.dtype == x.dtype
    assert bool(jnp.all(y == x))

    # encode / decode / quantize paths.
    assert bool(jnp.all(model.encode(x) == x))
    assert bool(jnp.all(model.decode(x) == x))
    q = IdentityFirstStage(vq_interface=True).quantize(x)
    assert bool(jnp.all(q[0] == x)) and q[1] is None

    # Explicit Pallas identity copy (direct HBM->HBM DMA, distinct buffer).
    y2 = jax.block_until_ready(identity_copy_pallas(x))
    assert y2.shape == x.shape and y2.dtype == x.dtype
    assert bool(jnp.all(y2 == x))

    # Odd-sized input: no padding / reshaping needed on the DMA path.
    x_odd = jax.random.normal(jax.random.PRNGKey(1), (3, 5, 7, 9), jnp.float32)
    y3 = jax.block_until_ready(identity_copy_pallas(x_odd))
    assert y3.shape == x_odd.shape and bool(jnp.all(y3 == x_odd))

    # Sub-32-bit dtype: DMA path has no sublane-tiling constraints.
    x_bf16 = x.astype(jnp.bfloat16)
    y4 = jax.block_until_ready(identity_copy_pallas(x_bf16))
    assert y4.dtype == jnp.bfloat16 and bool(jnp.all(y4 == x_bf16))

    print("KERNEL_OK")
</pallas_src>

<mosaic_0001>
module attributes {stable_mosaic.version = 11 : i64} {
  func.func @kernel(%arg0: memref<2x4x16x16xf32, #tpu.memory_space<any>>, %arg1: memref<2x4x16x16xf32, #tpu.memory_space<any>>, %arg2: memref<1x!tpu.dma_semaphore, #tpu.memory_space<semaphore_mem>>) attributes {dimension_semantics = [], scalar_prefetch = 0 : i64, scratch_operands = 1 : i64, tpu.core_type = #tpu.core_type<tc>} {
    %c0_i32 = arith.constant 0 : i32
    %c0_i32_0 = arith.constant 0 : i32
    %c0_i32_1 = arith.constant 0 : i32
    %c0_i32_2 = arith.constant 0 : i32
    %c0_i32_3 = arith.constant 0 : i32
    %0 = tpu.memref_slice %arg0[%c0_i32_0, %c0_i32_1, %c0_i32_2, %c0_i32_3] : memref<2x4x16x16xf32, #tpu.memory_space<any>> -> memref<2x4x16x16xf32, #tpu.memory_space<any>>
    %c0_i32_4 = arith.constant 0 : i32
    %c0_i32_5 = arith.constant 0 : i32
    %c0_i32_6 = arith.constant 0 : i32
    %c0_i32_7 = arith.constant 0 : i32
    %1 = tpu.memref_slice %arg1[%c0_i32_4, %c0_i32_5, %c0_i32_6, %c0_i32_7] : memref<2x4x16x16xf32, #tpu.memory_space<any>> -> memref<2x4x16x16xf32, #tpu.memory_space<any>>
    %2 = tpu.memref_slice %arg2[%c0_i32] : memref<1x!tpu.dma_semaphore, #tpu.memory_space<semaphore_mem>> -> memref<1x!tpu.dma_semaphore, #tpu.memory_space<semaphore_mem>>
    %3 = tpu.memref_squeeze %2 : memref<1x!tpu.dma_semaphore, #tpu.memory_space<semaphore_mem>> -> memref<!tpu.dma_semaphore, #tpu.memory_space<semaphore_mem>>
    tpu.enqueue_dma source(%0 : memref<2x4x16x16xf32, #tpu.memory_space<any>>) target(%1 : memref<2x4x16x16xf32, #tpu.memory_space<any>>) target_semaphore(%3 : memref<!tpu.dma_semaphore, #tpu.memory_space<semaphore_mem>>)
    %c0_i32_8 = arith.constant 0 : i32
    %c0_i32_9 = arith.constant 0 : i32
    %c0_i32_10 = arith.constant 0 : i32
    %c0_i32_11 = arith.constant 0 : i32
    %c0_i32_12 = arith.constant 0 : i32
    %4 = tpu.memref_slice %arg0[%c0_i32_9, %c0_i32_10, %c0_i32_11, %c0_i32_12] : memref<2x4x16x16xf32, #tpu.memory_space<any>> -> memref<2x4x16x16xf32, #tpu.memory_space<any>>
    %c0_i32_13 = arith.constant 0 : i32
    %c0_i32_14 = arith.constant 0 : i32
    %c0_i32_15 = arith.constant 0 : i32
    %c0_i32_16 = arith.constant 0 : i32
    %5 = tpu.memref_slice %arg1[%c0_i32_13, %c0_i32_14, %c0_i32_15, %c0_i32_16] : memref<2x4x16x16xf32, #tpu.memory_space<any>> -> memref<2x4x16x16xf32, #tpu.memory_space<any>>
    %6 = tpu.memref_slice %arg2[%c0_i32_8] : memref<1x!tpu.dma_semaphore, #tpu.memory_space<semaphore_mem>> -> memref<1x!tpu.dma_semaphore, #tpu.memory_space<semaphore_mem>>
    %7 = tpu.memref_squeeze %6 : memref<1x!tpu.dma_semaphore, #tpu.memory_space<semaphore_mem>> -> memref<!tpu.dma_semaphore, #tpu.memory_space<semaphore_mem>>
    tpu.wait_dma2 semaphore(%7 : memref<!tpu.dma_semaphore, #tpu.memory_space<semaphore_mem>>) src(%4 : memref<2x4x16x16xf32, #tpu.memory_space<any>>) dst(%5 : memref<2x4x16x16xf32, #tpu.memory_space<any>>)
    return
  }
}

</mosaic_0001>

<llo_original>
// kernel: tpu_custom_call.1
$region0: #{tpu_custom_call.1}
  #allocation0 [shape = 'u32[]', space=smem, size = 0x4, offset = 0x4, fixed_abs, tag = 'smem constant byte address 0x4 - core index']
  #allocation1 [shape = 'u32[144,128]{1,0:T(1,128)}', space=vmem, size = 0x12000, scoped, tag = 'internal scratch']
  #allocation2 [shape = 's32[1]{0}', space=sflag, size = 0x4, scoped, tag = 'scratch operand']
  #allocation3 [shape = 's32[]', space=sflag, size = 0x4, offset = 0, fixed_abs, tag = 'sflag constant byte address 0x0 - dummy sync flag']
  #allocation4 [shape = 'u32[0]{0}', space=smem, size = 0, offset = 0, fixed_abs, tag = 'smem constant byte address 0x0 - null']
  %s0 = inlined_call_operand.hbm [shape: f32[2,4,16,16], index: 0, kind: input, shape index: {}]
  %s1 = inlined_call_operand.hbm [shape: f32[2,4,16,16], index: 1, kind: output, shape index: {}]
  %s2 = sld [smem:[#allocation0]]
  $region2: #{tpu_custom_call.1} parent=0
    _
  %s4 = ssub.s32 1, %s2
  %s5 = scalar_select 0, %s4, %s2
  %s7 = sshll.u32 1, 14
  %s8 = sxor.u32 4294967295, %s7
  %s11 = sshll.u32 3, 24
  %s12 = sxor.u32 4294967295, %s11
  %s13 = sand.u32 0, %s12
  %s15 = sor.u32 %s13, 0
  %18 = dma.general %s0, 2048, %s1, [#allocation2], [#allocation3], [#allocation4], %s15, 0
  %s19 = smul.u32 2, 4
  %s20 = smul.u32 %s19, 16
  %s21 = smul.u32 %s20, 1
  %s22 = sshll.u32 %s21, 4
  %23 = dma.done [#allocation2], %s22
  %24 = vsyncmov [#allocation2]
  %s25 = vpop.sfrf %24
  %p26 = scmp.eq.s32.totalorder %s25, 0
  %p27 = pneg %p26
  %29 = shalt.err (%p27)

</llo_original>
